<compile_context>
chip_gen: v7x
topology: tpu7x:2x2x1
jax: 0.10.0
libtpu: 0.0.40
codegen_flags: <defaults>
</compile_context>

<pallas_src>
import functools

import jax
import jax.numpy as jnp
from jax.experimental import pallas as pl
from jax.experimental.pallas import tpu as pltpu

_LANES = 128
_SUBLANES = 8
_TILE_ROWS = 2048              # (2048, 128) f32 = 1 MiB per input tile
_SINGLE_BLOCK_MAX_ROWS = 4096  # <= 2 MiB per input -> single full-array block


def _bce_from_logits(x, t):
    """Elementwise BCE matching BCELoss(sigmoid(x), t) incl. the -100 log clamp."""
    z = jnp.log1p(jnp.exp(-jnp.abs(x)))                        # = -log_sigmoid(|x|)
    log_p = jnp.maximum(jnp.minimum(x, 0.0) - z, -100.0)       # log(sigmoid(x))
    log_1mp = jnp.maximum(jnp.minimum(-x, 0.0) - z, -100.0)    # log(1 - sigmoid(x))
    return -(t * log_p + (1.0 - t) * log_1mp)


def _bce_single_kernel(x_ref, t_ref, out_ref, *, total_elems):
    x = x_ref[...].astype(jnp.float32)
    t = t_ref[...].astype(jnp.float32)
    loss = _bce_from_logits(x, t)
    out_ref[0, 0] = jnp.sum(loss) / jnp.float32(total_elems)


def _bce_tiled_kernel(x_ref, t_ref, psum_ref):
    x = x_ref[...].astype(jnp.float32)
    t = t_ref[...].astype(jnp.float32)
    loss = _bce_from_logits(x, t)
    # Reduce the row tile to a single (8, 128) vreg with pure VPU adds; the one
    # cross-lane reduction happens outside the kernel on the tiny partials array.
    psum_ref[...] = jnp.sum(loss.reshape(-1, _SUBLANES, _LANES), axis=0)


def binary_cross_entropy_loss_2d(logits, targets):
    """Mean BCE over sigmoid(logits) vs targets (any matching shapes)."""
    assert logits.shape == targets.shape
    total = int(logits.size)

    x = jnp.reshape(logits, (-1,))
    t = jnp.reshape(targets, (-1,))

    rows_min = pl.cdiv(total, _LANES)
    single = rows_min <= _SINGLE_BLOCK_MAX_ROWS
    row_quant = _SUBLANES if single else _TILE_ROWS
    rows = pl.cdiv(total, row_quant * _LANES) * row_quant

    pad = rows * _LANES - total
    if pad:
        # Sentinel padding gives exactly zero loss (no in-kernel masking):
        # clamped log(sigmoid(-1e10)) = -100 is multiplied by target 0, and
        # log(1 - sigmoid(-1e10)) = 0.
        x = jnp.concatenate([x, jnp.full((pad,), -1e10, x.dtype)])
        t = jnp.concatenate([t, jnp.zeros((pad,), t.dtype)])

    x2d = x.reshape(rows, _LANES)
    t2d = t.reshape(rows, _LANES)

    if single:
        kernel = functools.partial(_bce_single_kernel, total_elems=total)
        out = pl.pallas_call(
            kernel,
            out_shape=jax.ShapeDtypeStruct((1, 1), jnp.float32),
            in_specs=[
                pl.BlockSpec(memory_space=pltpu.VMEM),
                pl.BlockSpec(memory_space=pltpu.VMEM),
            ],
            out_specs=pl.BlockSpec(memory_space=pltpu.SMEM),
        )(x2d, t2d)
        return out[0, 0]

    num_tiles = rows // _TILE_ROWS
    partials = pl.pallas_call(
        _bce_tiled_kernel,
        out_shape=jax.ShapeDtypeStruct((num_tiles * _SUBLANES, _LANES), jnp.float32),
        grid_spec=pltpu.PrefetchScalarGridSpec(
            num_scalar_prefetch=0,
            grid=(num_tiles,),
            in_specs=[
                pl.BlockSpec((_TILE_ROWS, _LANES), lambda i: (i, 0)),
                pl.BlockSpec((_TILE_ROWS, _LANES), lambda i: (i, 0)),
            ],
            out_specs=pl.BlockSpec((_SUBLANES, _LANES), lambda i: (i, 0)),
        ),
        compiler_params=pltpu.CompilerParams(
            dimension_semantics=("parallel",),
        ),
    )(x2d, t2d)
    return jnp.sum(partials) / jnp.float32(total)


def _reference(logits, targets):
    # Mirrors PyTorch exactly: sigmoid, then BCELoss with its -100 log clamp.
    p = jax.nn.sigmoid(logits.astype(jnp.float32))
    t = targets.astype(jnp.float32)
    log_p = jnp.maximum(jnp.log(p), -100.0)
    log_1mp = jnp.maximum(jnp.log(1.0 - p), -100.0)
    return jnp.mean(-(t * log_p + (1.0 - t) * log_1mp))


if __name__ == "__main__":
    key = jax.random.PRNGKey(0)
    k1, k2 = jax.random.split(key)

    # NCHW inputs consistent with a 2D segmentation-style loss.
    logits = jax.random.normal(k1, (2, 4, 16, 16), dtype=jnp.float32)
    targets = (
        jax.random.uniform(k2, (2, 4, 16, 16), dtype=jnp.float32) > 0.5
    ).astype(jnp.float32)

    loss = binary_cross_entropy_loss_2d(logits, targets)
    loss = jax.block_until_ready(loss)

    ref = _reference(logits, targets)
    assert jnp.allclose(loss, ref, rtol=1e-5, atol=1e-6), (loss, ref)

    print("KERNEL_OK")
</pallas_src>

<mosaic_0001>
module attributes {stable_mosaic.version = 11 : i64} {
  func.func @_bce_single_kernel(%arg0: memref<16x128xf32, #tpu.memory_space<vmem>>, %arg1: memref<16x128xf32, #tpu.memory_space<vmem>>, %arg2: memref<1x1xf32, #tpu.memory_space<smem>>) attributes {dimension_semantics = [], scalar_prefetch = 0 : i64, scratch_operands = 0 : i64, tpu.core_type = #tpu.core_type<tc>} {
    %c0 = arith.constant 0 : index
    %c0_0 = arith.constant 0 : index
    %0 = vector.load %arg0[%c0, %c0_0] : memref<16x128xf32, #tpu.memory_space<vmem>>, vector<16x128xf32>
    %c0_1 = arith.constant 0 : index
    %c0_2 = arith.constant 0 : index
    %1 = vector.load %arg1[%c0_1, %c0_2] : memref<16x128xf32, #tpu.memory_space<vmem>>, vector<16x128xf32>
    %2 = math.absf %0 : vector<16x128xf32>
    %cst = arith.constant 0.000000e+00 : f32
    %3 = vector.broadcast %cst : f32 to vector<16x128xf32>
    %4 = arith.subf %3, %2 : vector<16x128xf32>
    %5 = math.exp %4 : vector<16x128xf32>
    %6 = math.log1p %5 : vector<16x128xf32>
    %cst_3 = arith.constant 0.000000e+00 : f32
    %7 = vector.broadcast %cst_3 : f32 to vector<16x128xf32>
    %8 = arith.minimumf %0, %7 : vector<16x128xf32>
    %9 = arith.subf %8, %6 : vector<16x128xf32>
    %cst_4 = arith.constant -1.000000e+02 : f32
    %10 = vector.broadcast %cst_4 : f32 to vector<16x128xf32>
    %11 = arith.maximumf %9, %10 : vector<16x128xf32>
    %cst_5 = arith.constant 0.000000e+00 : f32
    %12 = vector.broadcast %cst_5 : f32 to vector<16x128xf32>
    %13 = arith.subf %12, %0 : vector<16x128xf32>
    %cst_6 = arith.constant 0.000000e+00 : f32
    %14 = vector.broadcast %cst_6 : f32 to vector<16x128xf32>
    %15 = arith.minimumf %13, %14 : vector<16x128xf32>
    %16 = arith.subf %15, %6 : vector<16x128xf32>
    %cst_7 = arith.constant -1.000000e+02 : f32
    %17 = vector.broadcast %cst_7 : f32 to vector<16x128xf32>
    %18 = arith.maximumf %16, %17 : vector<16x128xf32>
    %19 = arith.mulf %1, %11 : vector<16x128xf32>
    %cst_8 = arith.constant 1.000000e+00 : f32
    %20 = vector.broadcast %cst_8 : f32 to vector<16x128xf32>
    %21 = arith.subf %20, %1 : vector<16x128xf32>
    %22 = arith.mulf %21, %18 : vector<16x128xf32>
    %23 = arith.addf %19, %22 : vector<16x128xf32>
    %cst_9 = arith.constant 0.000000e+00 : f32
    %24 = vector.broadcast %cst_9 : f32 to vector<16x128xf32>
    %25 = arith.subf %24, %23 : vector<16x128xf32>
    %26 = vector.shape_cast %25 : vector<16x128xf32> to vector<1x16x128xf32>
    %cst_10 = arith.constant dense<0.000000e+00> : vector<1xf32>
    %27 = vector.multi_reduction <add>, %26, %cst_10 [1, 2] : vector<1x16x128xf32> to vector<1xf32>
    %28 = vector.shape_cast %27 : vector<1xf32> to vector<1x1x1xf32>
    %29 = vector.extract %28[0, 0, 0] : f32 from vector<1x1x1xf32>
    %cst_11 = arith.constant 2.048000e+03 : f32
    %30 = arith.divf %29, %cst_11 : f32
    %c0_12 = arith.constant 0 : index
    %c0_13 = arith.constant 0 : index
    %31 = memref.load %arg2[%c0_12, %c0_13] : memref<1x1xf32, #tpu.memory_space<smem>>
    memref.store %30, %arg2[%c0_12, %c0_13] : memref<1x1xf32, #tpu.memory_space<smem>>
    return
  }
}

</mosaic_0001>

<llo_original>
// kernel: tpu_custom_call.1
$region0: #{tpu_custom_call.1}
  #allocation0 [shape = 'u32[]', space=smem, size = 0x4, offset = 0x4, fixed_abs, tag = 'smem constant byte address 0x4 - core index']
  #allocation1 [shape = 'u32[144,128]{1,0:T(1,128)}', space=vmem, size = 0x12000, scoped, tag = 'internal scratch']
  %s0 = inlined_call_operand.hbm [shape: f32[16,128], index: 0, kind: input, shape index: {}]
  %s1 = inlined_call_operand.hbm [shape: f32[16,128], index: 1, kind: input, shape index: {}]
  %s2 = inlined_call_operand.hbm [shape: f32[1,1], index: 2, kind: output, shape index: {}]
  %s3 = sld [smem:[#allocation0]]
  $region26: #{tpu_custom_call.1} parent=0
    _
  %s5 = ssub.s32 1, %s3
  %s6 = scalar_select 0, %s5, %s3
  $region1: #{tpu_custom_call.1} parent=0
    #allocation2 [shape = 'u8[8192]{0}', space=vmem, size = 0x2000, scoped, tag = 'input window, operand 0, single buffered']
    #allocation3 [shape = 's32[1]{0}', space=sflag, size = 0x4, scoped, tag = 'scoped memory for tpu_custom_call.1']
    #allocation4 [shape = 's32[1]{0}', space=sflag, size = 0x4, scoped, tag = 'scoped memory for tpu_custom_call.1']
    #allocation5 [shape = 'u8[8192]{0}', space=vmem, size = 0x2000, scoped, tag = 'input window, operand 1, single buffered']
    #allocation6 [shape = 's32[1]{0}', space=sflag, size = 0x4, scoped, tag = 'scoped memory for tpu_custom_call.1']
    #allocation7 [shape = 'u8[512]{0}', space=smem, size = 0x200, scoped, tag = 'output window, operand 0, single buffered']
    %7 = vsyncpa [#allocation3], 0
    %8 = vsyncpa [#allocation6], 0
    %9 = vsyncpa [#allocation4], 0
    // Predicated region
    $region2: #{tpu_custom_call.1} parent=1 // pred_check
      _
    $region3: #{tpu_custom_call.1} parent=1 // pred_check_branch
      %11 = sbr.rel (0) target = $region5
    $region4: #{tpu_custom_call.1} parent=1 // pred_region
      %s13 = ssub.s32 256, 256
      %14 = vsyncadd [#allocation3], %s13
      %s15 = sshll.u32 [#allocation2], 4
      %s16 = int_to_ptr.vmem [resolvable:$true] %s15
      %21 = dma.hbm_to_vmem [thread:$0]  %s0, 256, %s16, [#allocation3], 128, 128, 8
    $region5: #{tpu_custom_call.1} parent=1 // pred_fallthru
      _
    // Predicated region
    $region6: #{tpu_custom_call.1} parent=1 // pred_check
      _
    $region7: #{tpu_custom_call.1} parent=1 // pred_check_branch
      %23 = sbr.rel (0) target = $region9
    $region8: #{tpu_custom_call.1} parent=1 // pred_region
      %s25 = ssub.s32 256, 256
      %26 = vsyncadd [#allocation6], %s25
      %s27 = sshll.u32 [#allocation5], 4
      %s28 = int_to_ptr.vmem [resolvable:$true] %s27
      %33 = dma.hbm_to_vmem [thread:$0]  %s1, 256, %s28, [#allocation6], 128, 128, 8
    $region9: #{tpu_custom_call.1} parent=1 // pred_fallthru
      _
    // Predicated region
    $region10: #{tpu_custom_call.1} parent=1 // pred_check
      _
    $region11: #{tpu_custom_call.1} parent=1 // pred_check_branch
      %35 = sbr.rel (0) target = $region13
    $region12: #{tpu_custom_call.1} parent=1 // pred_region
      %36 = dma.done [#allocation3], 256
    $region13: #{tpu_custom_call.1} parent=1 // pred_fallthru
      _
    // Predicated region
    $region14: #{tpu_custom_call.1} parent=1 // pred_check
      _
    $region15: #{tpu_custom_call.1} parent=1 // pred_check_branch
      %38 = sbr.rel (0) target = $region17
    $region16: #{tpu_custom_call.1} parent=1 // pred_region
      %39 = dma.done [#allocation6], 256
    $region17: #{tpu_custom_call.1} parent=1 // pred_fallthru
      _
    %v40 = vld [vmem:[#allocation2] sm:$0xff]
    %v41 = vld [vmem:[#allocation2 + $0x8] sm:$0xff]
    %v42 = vld [vmem:[#allocation5] sm:$0xff]
    %v43 = vld [vmem:[#allocation5 + $0x8] sm:$0xff]
    %v44 = vand.u32 2147483647, %v40
    %v45 = vand.u32 2147483647, %v41
    %v46 = vsub.f32 0.0, %v44
    %v47 = vsub.f32 0.0, %v45
    %v48 = vmul.f32 %v46, 1.442695
    %v49 = vpow.pop %v48
    %v50 = vmul.f32 %v47, 1.442695
    %v51 = vpow.pop %v50
    %v52 = vadd.f32 %v49, 1.0
    %v53 = vlog2.pop %v52
    %v54 = vmul.f32 %v53, 0.6931472
    %v55 = vmul.f32 -0.5, %v49
    %v56 = vadd.f32 %v55, 1.0
    %v57 = vmul.f32 %v56, %v49
    %v58 = vand.u32 2147483647, %v49
    %vm59 = vcmp.lt.f32.partialorder %v58, 0.0004427343
    %v60 = vsel %vm59, %v57, %v54
    %v61 = vadd.f32 %v51, 1.0
    %v62 = vlog2.pop %v61
    %v63 = vmul.f32 %v62, 0.6931472
    %v64 = vmul.f32 -0.5, %v51
    %v65 = vadd.f32 %v64, 1.0
    %v66 = vmul.f32 %v65, %v51
    %v67 = vand.u32 2147483647, %v51
    %vm68 = vcmp.lt.f32.partialorder %v67, 0.0004427343
    %v69 = vsel %vm68, %v66, %v63
    %v70 = vmin.f32 %v40, 0.0
    %v71 = vmin.f32 %v41, 0.0
    %v72 = vsub.f32 %v70, %v60
    %v73 = vsub.f32 %v71, %v69
    %v74 = vmax.f32 %v72, -100.0
    %v75 = vmax.f32 %v73, -100.0
    %v76 = vsub.f32 0.0, %v40
    %v77 = vsub.f32 0.0, %v41
    %v78 = vmin.f32 %v76, 0.0
    %v79 = vmin.f32 %v77, 0.0
    %v80 = vsub.f32 %v78, %v60
    %v81 = vsub.f32 %v79, %v69
    %v82 = vmax.f32 %v80, -100.0
    %v83 = vmax.f32 %v81, -100.0
    %v84 = vmul.f32 %v42, %v74
    %v85 = vmul.f32 %v43, %v75
    %v86 = vsub.f32 1.0, %v42
    %v87 = vsub.f32 1.0, %v43
    %v88 = vmul.f32 %v86, %v82
    %v89 = vmul.f32 %v87, %v83
    %v90 = vadd.f32 %v84, %v88
    %v91 = vadd.f32 %v85, %v89
    %v92 = vsub.f32 0.0, %v90
    %v93 = vsub.f32 0.0, %v91
    %v94 = vadd.f32 %v92, %v93
    %95 = vadd.xlane.f32.xlu0 %v94
    %v96 = vpop.xlane.xlu0 %95
    %v97 = vrot.slane %v96, 4
    %v98 = vadd.f32 %v96, %v97
    %v99 = vrot.slane %v98, 2
    %v100 = vadd.f32 %v98, %v99
    %v101 = vrot.slane %v100, 1
    %v102 = vadd.f32 %v100, %v101
    %s103 = vtos %v102
    %v104 = vrcp.pop 2048.0
    %s105 = vtos %v104
    %s106 = smul.f32 %s103, %s105
    %s107 = scalar_lea.smem [#allocation7], 0
    %108 = sst [smem:[%s107]] %s106
    // Predicated region
    $region18: #{tpu_custom_call.1} parent=1 // pred_check
      _
    $region19: #{tpu_custom_call.1} parent=1 // pred_check_branch
      %110 = sbr.rel (0) target = $region21
    $region20: #{tpu_custom_call.1} parent=1 // pred_region
      %s112 = ssub.s32 16, 16
      %113 = vsyncadd [#allocation4], %s112
      %116 = dma.smem_to_hbm [#allocation7], 16, %s2, [#allocation4]
    $region21: #{tpu_custom_call.1} parent=1 // pred_fallthru
      _
    // Predicated region
    $region22: #{tpu_custom_call.1} parent=1 // pred_check
      _
    $region23: #{tpu_custom_call.1} parent=1 // pred_check_branch
      %118 = sbr.rel (0) target = $region25
    $region24: #{tpu_custom_call.1} parent=1 // pred_region
      %119 = dma.done [#allocation4], 16
    $region25: #{tpu_custom_call.1} parent=1 // pred_fallthru
      _
    %120 = sfence
    %121 = vsyncpa [#allocation3], 1
    %122 = vsyncpa [#allocation6], 1
    %123 = vsyncpa [#allocation4], 1

</llo_original>
